<compile_context>
chip_gen: v5e
topology: v5e:2x2
jax: 0.10.0
libtpu: 0.0.40
codegen_flags: <defaults>
</compile_context>

<pallas_src>
import functools

import jax
import jax.numpy as jnp
from jax.experimental import pallas as pl
from jax.experimental.pallas import tpu as pltpu

EPS = 1e-5


def _silu(x):
    return x * jax.nn.sigmoid(x)


def _slab_kernel(x_ref, p1_ref, p2_ref, y_ref, stats_ref, *,
                 d_in, hidden, use_bf16):
    """Pass 1: fused core|gate two-layer MLP -> pre-BN slab (BM, 2*D_out),
    plus per-feature sum / sum-of-squares accumulated over the batch grid."""
    i = pl.program_id(0)

    x = x_ref[...]                                   # (BM, d_in)  f32
    w1 = p1_ref[0:d_in, :]                           # (d_in, 2H)
    b1 = p1_ref[d_in:d_in + 1, :]                    # (1, 2H)
    w2 = p2_ref[0:2 * hidden, :]                     # (2H, 2*d_out) block-diag
    b2 = p2_ref[2 * hidden:2 * hidden + 1, :]        # (1, 2*d_out)

    if use_bf16:
        xm, w1m = x.astype(jnp.bfloat16), w1.astype(jnp.bfloat16)
    else:
        xm, w1m = x, w1
    h = jnp.dot(xm, w1m, preferred_element_type=jnp.float32) + b1
    h = _silu(h)

    if use_bf16:
        hm, w2m = h.astype(jnp.bfloat16), w2.astype(jnp.bfloat16)
    else:
        hm, w2m = h, w2
    y = jnp.dot(hm, w2m, preferred_element_type=jnp.float32) + b2  # (BM, 2*d_out)

    y_ref[...] = y

    # per-feature partial statistics for the joint (core|gate) BatchNorm
    s = jnp.sum(y, axis=0, keepdims=True)            # (1, 2*d_out)
    sq = jnp.sum(y * y, axis=0, keepdims=True)       # (1, 2*d_out)
    upd = jnp.concatenate([s, sq], axis=0)           # (2, 2*d_out)

    @pl.when(i == 0)
    def _():
        stats_ref[...] = jnp.zeros_like(stats_ref)

    stats_ref[...] += upd


def _bn_gate_kernel(y_ref, stats_ref, pbn_ref, o_ref, *, d_out, inv_b):
    """Pass 2: joint BatchNorm over the core|gate slab, SiLU / sigmoid, gating."""
    y = y_ref[...]                                   # (BM, 2*d_out) f32
    s = stats_ref[0:1, :]
    sq = stats_ref[1:2, :]
    gamma = pbn_ref[0:1, :]
    beta = pbn_ref[1:2, :]

    inv_b32 = jnp.float32(inv_b)
    mean = s * inv_b32
    var = sq * inv_b32 - mean * mean                 # biased batch variance
    ynorm = (y - mean) * jax.lax.rsqrt(var + EPS) * gamma + beta

    sig = jax.nn.sigmoid(ynorm)                      # one EUP pass over the slab
    core = ynorm[:, 0:d_out] * sig[:, 0:d_out]       # SiLU(BN(core))
    gate = sig[:, d_out:2 * d_out]                   # Sigmoid(BN(gate))
    o_ref[...] = (core * gate).astype(o_ref.dtype)


def gated_mlp(x, params, *, use_bf16_matmul=False, block_rows=512):
    """x: (B, D_in) float32.  params: dict of weights (see init_params)."""
    B, d_in = x.shape
    hidden = params["w1c"].shape[1]
    d_out = params["w2c"].shape[1]

    # ---- pack parameters into 3 contiguous slabs (done once, outside kernel) ----
    w1 = jnp.concatenate([params["w1c"], params["w1g"]], axis=1)        # (d_in, 2H)
    b1 = jnp.concatenate([params["b1c"], params["b1g"]], axis=1)        # (1, 2H)
    z = jnp.zeros((hidden, d_out), jnp.float32)
    w2 = jnp.concatenate(                                               # (2H, 2*d_out)
        [jnp.concatenate([params["w2c"], z], axis=1),
         jnp.concatenate([z, params["w2g"]], axis=1)], axis=0)
    b2 = jnp.concatenate([params["b2c"], params["b2g"]], axis=1)        # (1, 2*d_out)
    p1 = jnp.concatenate([w1, b1], axis=0)                              # (d_in+1, 2H)
    p2 = jnp.concatenate([w2, b2], axis=0)                              # (2H+1, 2*d_out)
    pbn = jnp.concatenate(                                              # (2, 2*d_out)
        [jnp.concatenate([params["g1"], params["g2"]], axis=1),
         jnp.concatenate([params["be1"], params["be2"]], axis=1)], axis=0)

    bm = B if B <= block_rows else block_rows
    # TODO(synk): pad ragged batch tails instead of requiring divisibility.
    assert B % bm == 0, "batch must be divisible by the row-tile size"
    n_tiles = B // bm

    # ---- pass 1: fused MLP slab + batch statistics ----
    slab = functools.partial(_slab_kernel, d_in=d_in, hidden=hidden,
                             use_bf16=use_bf16_matmul)
    y, stats = pl.pallas_call(
        slab,
        out_shape=(jax.ShapeDtypeStruct((B, 2 * d_out), jnp.float32),
                   jax.ShapeDtypeStruct((2, 2 * d_out), jnp.float32)),
        grid=(n_tiles,),
        in_specs=[
            pl.BlockSpec((bm, d_in), lambda i: (i, 0)),
            pl.BlockSpec(p1.shape, lambda i: (0, 0)),
            pl.BlockSpec(p2.shape, lambda i: (0, 0)),
        ],
        out_specs=[
            pl.BlockSpec((bm, 2 * d_out), lambda i: (i, 0)),
            pl.BlockSpec((2, 2 * d_out), lambda i: (0, 0)),   # resident accumulator
        ],
        compiler_params=pltpu.CompilerParams(
            dimension_semantics=("arbitrary",)),
    )(x, p1, p2)

    # ---- pass 2: joint BN + activations + gating ----
    bn_gate = functools.partial(_bn_gate_kernel, d_out=d_out, inv_b=1.0 / B)
    out = pl.pallas_call(
        bn_gate,
        out_shape=jax.ShapeDtypeStruct((B, d_out), x.dtype),
        grid=(n_tiles,),
        in_specs=[
            pl.BlockSpec((bm, 2 * d_out), lambda i: (i, 0)),
            pl.BlockSpec((2, 2 * d_out), lambda i: (0, 0)),
            pl.BlockSpec((2, 2 * d_out), lambda i: (0, 0)),
        ],
        out_specs=pl.BlockSpec((bm, d_out), lambda i: (i, 0)),
        compiler_params=pltpu.CompilerParams(
            dimension_semantics=("parallel",)),
    )(y, stats, pbn)
    return out


def init_params(key, input_dim, hidden_dim, output_dim):
    """Deterministic synthetic parameters (shapes match the PyTorch module)."""
    ks = jax.random.split(key, 8)
    s1 = 1.0 / jnp.sqrt(input_dim)
    s2 = 1.0 / jnp.sqrt(hidden_dim)
    return {
        "w1c": jax.random.uniform(ks[0], (input_dim, hidden_dim), jnp.float32, -s1, s1),
        "b1c": jax.random.uniform(ks[1], (1, hidden_dim), jnp.float32, -s1, s1),
        "w2c": jax.random.uniform(ks[2], (hidden_dim, output_dim), jnp.float32, -s2, s2),
        "b2c": jax.random.uniform(ks[3], (1, output_dim), jnp.float32, -s2, s2),
        "w1g": jax.random.uniform(ks[4], (input_dim, hidden_dim), jnp.float32, -s1, s1),
        "b1g": jax.random.uniform(ks[5], (1, hidden_dim), jnp.float32, -s1, s1),
        "w2g": jax.random.uniform(ks[6], (hidden_dim, output_dim), jnp.float32, -s2, s2),
        "b2g": jax.random.uniform(ks[7], (1, output_dim), jnp.float32, -s2, s2),
        "g1": jnp.ones((1, output_dim), jnp.float32),
        "be1": jnp.zeros((1, output_dim), jnp.float32),
        "g2": jnp.ones((1, output_dim), jnp.float32),
        "be2": jnp.zeros((1, output_dim), jnp.float32),
    }


def gated_mlp_reference(x, p):
    """Pure-JAX reference mirroring the PyTorch module (training-mode BN)."""
    def mlp(w1, b1, w2, b2):
        h = x @ w1 + b1
        h = h * jax.nn.sigmoid(h)
        return h @ w2 + b2

    def bn(y):
        m = jnp.mean(y, axis=0, keepdims=True)
        v = jnp.mean((y - m) ** 2, axis=0, keepdims=True)
        return (y - m) / jnp.sqrt(v + EPS)

    core = bn(mlp(p["w1c"], p["b1c"], p["w2c"], p["b2c"])) * p["g1"] + p["be1"]
    gate = bn(mlp(p["w1g"], p["b1g"], p["w2g"], p["b2g"])) * p["g2"] + p["be2"]
    core = core * jax.nn.sigmoid(core)
    gate = jax.nn.sigmoid(gate)
    return core * gate


if __name__ == "__main__":
    B, D_IN, H, D_OUT = 8, 16, 32, 16

    key = jax.random.PRNGKey(0)
    k_x, k_p = jax.random.split(key)
    x = jax.random.normal(k_x, (B, D_IN), jnp.float32)
    params = init_params(k_p, D_IN, H, D_OUT)

    ref = gated_mlp_reference(x, params)

    # f32 MXU path (bit-faithful to the PyTorch module's f32 math)
    out = jax.block_until_ready(gated_mlp(x, params))
    assert out.shape == (B, D_OUT)
    assert jnp.allclose(out, ref, atol=1e-4, rtol=1e-4), "f32 mismatch vs reference"

    # bf16 MXU-operand path (v6e/v5e optimization; f32 accumulate + f32 epilogue)
    out_bf16 = jax.block_until_ready(gated_mlp(x, params, use_bf16_matmul=True))
    assert jnp.allclose(out_bf16, ref, atol=5e-2, rtol=5e-2), "bf16 mismatch vs reference"

    print("KERNEL_OK")
</pallas_src>

<mosaic_0001>
module attributes {stable_mosaic.version = 11 : i64} {
  func.func @_slab_kernel(%arg0: i32, %arg1: memref<8x16xf32, #tpu.memory_space<vmem>>, %arg2: memref<17x64xf32, #tpu.memory_space<vmem>>, %arg3: memref<65x32xf32, #tpu.memory_space<vmem>>, %arg4: memref<8x32xf32, #tpu.memory_space<vmem>>, %arg5: memref<2x32xf32, #tpu.memory_space<vmem>>) attributes {dimension_semantics = [#tpu.dimension_semantics<arbitrary>], iteration_bounds = array<i64: 1>, scalar_prefetch = 0 : i64, scratch_operands = 0 : i64, tpu.core_type = #tpu.core_type<tc>, window_params = [{transform_indices = @transform_0, window_bounds = array<i64: 8, 16>}, {pipeline_mode = #tpu.pipeline_mode<synchronous>, transform_indices = @transform_1, window_bounds = array<i64: 17, 64>}, {pipeline_mode = #tpu.pipeline_mode<synchronous>, transform_indices = @transform_2, window_bounds = array<i64: 65, 32>}, {transform_indices = @transform_3, window_bounds = array<i64: 8, 32>}, {pipeline_mode = #tpu.pipeline_mode<synchronous>, transform_indices = @transform_4, window_bounds = array<i64: 2, 32>}]} {
    %c0 = arith.constant 0 : index
    %c0_0 = arith.constant 0 : index
    %0 = vector.load %arg1[%c0, %c0_0] : memref<8x16xf32, #tpu.memory_space<vmem>>, vector<8x16xf32>
    %c0_1 = arith.constant 0 : index
    %c0_2 = arith.constant 0 : index
    %1 = vector.load %arg2[%c0_1, %c0_2] : memref<17x64xf32, #tpu.memory_space<vmem>>, vector<16x64xf32>
    %c16 = arith.constant 16 : index
    %c0_3 = arith.constant 0 : index
    %2 = vector.load %arg2[%c16, %c0_3] : memref<17x64xf32, #tpu.memory_space<vmem>>, vector<1x64xf32>
    %c0_4 = arith.constant 0 : index
    %c0_5 = arith.constant 0 : index
    %3 = vector.load %arg3[%c0_4, %c0_5] : memref<65x32xf32, #tpu.memory_space<vmem>>, vector<64x32xf32>
    %c64 = arith.constant 64 : index
    %c0_6 = arith.constant 0 : index
    %4 = vector.load %arg3[%c64, %c0_6] : memref<65x32xf32, #tpu.memory_space<vmem>>, vector<1x32xf32>
    %cst = arith.constant dense<0.000000e+00> : vector<8x64xf32>
    %5 = tpu.matmul %0, %1, %cst {dimension_numbers = #tpu.dot_dimension_numbers<[1], [0], [0], [1], [0, 0, 1, 1], [], []>} : vector<8x16xf32>, vector<16x64xf32>, vector<8x64xf32> -> vector<8x64xf32>
    %6 = vector.broadcast %2 : vector<1x64xf32> to vector<8x64xf32>
    %7 = arith.addf %5, %6 : vector<8x64xf32>
    %8 = arith.negf %7 : vector<8x64xf32>
    %9 = math.exp %8 : vector<8x64xf32>
    %cst_7 = arith.constant 1.000000e+00 : f32
    %10 = vector.broadcast %cst_7 : f32 to vector<8x64xf32>
    %11 = arith.addf %10, %9 : vector<8x64xf32>
    %12 = arith.divf %10, %11 : vector<8x64xf32>
    %13 = arith.mulf %7, %12 : vector<8x64xf32>
    %cst_8 = arith.constant dense<0.000000e+00> : vector<8x32xf32>
    %14 = tpu.matmul %13, %3, %cst_8 {dimension_numbers = #tpu.dot_dimension_numbers<[1], [0], [0], [1], [0, 0, 1, 1], [], []>} : vector<8x64xf32>, vector<64x32xf32>, vector<8x32xf32> -> vector<8x32xf32>
    %15 = vector.broadcast %4 : vector<1x32xf32> to vector<8x32xf32>
    %16 = arith.addf %14, %15 : vector<8x32xf32>
    %c0_9 = arith.constant 0 : index
    %c0_10 = arith.constant 0 : index
    %17 = vector.load %arg4[%c0_9, %c0_10] : memref<8x32xf32, #tpu.memory_space<vmem>>, vector<8x32xf32>
    tpu.vector_store %arg4[%c0_9, %c0_10], %16 {strides = array<i32>} : memref<8x32xf32, #tpu.memory_space<vmem>>, vector<8x32xf32>,
    %cst_11 = arith.constant dense<0.000000e+00> : vector<32xf32>
    %18 = vector.multi_reduction <add>, %16, %cst_11 [0] : vector<8x32xf32> to vector<32xf32>
    %19 = vector.shape_cast %18 : vector<32xf32> to vector<1x32xf32>
    %20 = arith.mulf %16, %16 : vector<8x32xf32>
    %cst_12 = arith.constant dense<0.000000e+00> : vector<32xf32>
    %21 = vector.multi_reduction <add>, %20, %cst_12 [0] : vector<8x32xf32> to vector<32xf32>
    %22 = vector.shape_cast %21 : vector<32xf32> to vector<1x32xf32>
    %23 = tpu.concatenate %19, %22 in 0 : vector<1x32xf32>, vector<1x32xf32> -> vector<2x32xf32>
    %c0_i32 = arith.constant 0 : i32
    %24 = arith.cmpi eq, %arg0, %c0_i32 : i32
    %25 = arith.extui %24 : i1 to i32
    %c0_i32_13 = arith.constant 0 : i32
    %26 = arith.cmpi ne, %25, %c0_i32_13 : i32
    scf.if %26 {
      %cst_18 = arith.constant 0.000000e+00 : f32
      %30 = vector.broadcast %cst_18 : f32 to vector<2x32xf32>
      %c0_19 = arith.constant 0 : index
      %c0_20 = arith.constant 0 : index
      %31 = vector.load %arg5[%c0_19, %c0_20] : memref<2x32xf32, #tpu.memory_space<vmem>>, vector<2x32xf32>
      tpu.vector_store %arg5[%c0_19, %c0_20], %30 {strides = array<i32>} : memref<2x32xf32, #tpu.memory_space<vmem>>, vector<2x32xf32>,
    } else {
    }
    %c0_14 = arith.constant 0 : index
    %c0_15 = arith.constant 0 : index
    %27 = vector.load %arg5[%c0_14, %c0_15] : memref<2x32xf32, #tpu.memory_space<vmem>>, vector<2x32xf32>
    %28 = arith.addf %27, %23 : vector<2x32xf32>
    %c0_16 = arith.constant 0 : index
    %c0_17 = arith.constant 0 : index
    %29 = vector.load %arg5[%c0_16, %c0_17] : memref<2x32xf32, #tpu.memory_space<vmem>>, vector<2x32xf32>
    tpu.vector_store %arg5[%c0_16, %c0_17], %28 {strides = array<i32>} : memref<2x32xf32, #tpu.memory_space<vmem>>, vector<2x32xf32>,
    return
  }
  func.func @transform_0(%arg0: i32) -> (i32, i32) {
    %c0_i32 = arith.constant 0 : i32
    %c0_i32_0 = arith.constant 0 : i32
    return %arg0, %c0_i32 : i32, i32
  }
  func.func @transform_1(%arg0: i32) -> (i32, i32) {
    %c0_i32 = arith.constant 0 : i32
    %c0_i32_0 = arith.constant 0 : i32
    %c0_i32_1 = arith.constant 0 : i32
    return %c0_i32, %c0_i32_0 : i32, i32
  }
  func.func @transform_2(%arg0: i32) -> (i32, i32) {
    %c0_i32 = arith.constant 0 : i32
    %c0_i32_0 = arith.constant 0 : i32
    %c0_i32_1 = arith.constant 0 : i32
    return %c0_i32, %c0_i32_0 : i32, i32
  }
  func.func @transform_3(%arg0: i32) -> (i32, i32) {
    %c0_i32 = arith.constant 0 : i32
    %c0_i32_0 = arith.constant 0 : i32
    return %arg0, %c0_i32 : i32, i32
  }
  func.func @transform_4(%arg0: i32) -> (i32, i32) {
    %c0_i32 = arith.constant 0 : i32
    %c0_i32_0 = arith.constant 0 : i32
    %c0_i32_1 = arith.constant 0 : i32
    return %c0_i32, %c0_i32_0 : i32, i32
  }
}

</mosaic_0001>

<llo_original>
// kernel: tpu_custom_call.1
$region0: #{tpu_custom_call.1}
  #allocation0 [shape = 'u32[]', space=smem, size = 0x4, offset = 0x4, fixed_abs, tag = 'smem constant byte address 0x4 - core index']
  #allocation1 [shape = 'u32[72,128]{1,0:T(1,128)}', space=vmem, size = 0x9000, scoped, tag = 'internal scratch']
  %s0 = inlined_call_operand.vmem [shape: f32[8,16], index: 0, kind: input, shape index: {}]
  %s1 = inlined_call_operand.vmem [shape: f32[17,64], index: 1, kind: input, shape index: {}]
  %s2 = inlined_call_operand.vmem [shape: f32[65,32], index: 2, kind: input, shape index: {}]
  %s3 = inlined_call_operand.hbm [shape: f32[8,32], index: 3, kind: output, shape index: {0}]
  %s4 = inlined_call_operand.hbm [shape: f32[2,32], index: 4, kind: output, shape index: {1}]
  %5 = xla_tuple %s3, %s4
  %s6 = sld [smem:[#allocation0]]
  $region34: #{tpu_custom_call.1} parent=0
    _
  %s8 = ssub.s32 1, %s6
  %s9 = scalar_select 0, %s8, %s6
  $region1: #{tpu_custom_call.1} parent=0
    #allocation2 [shape = 'u8[4096]{0}', space=vmem, size = 0x1000, scoped, tag = 'output window, operand 0, single buffered']
    #allocation3 [shape = 's32[1]{0}', space=sflag, size = 0x4, scoped, tag = 'scoped memory for tpu_custom_call.1']
    #allocation4 [shape = 'u8[1024]{0}', space=vmem, size = 0x400, scoped, tag = 'output window, operand 1, single buffered']
    #allocation5 [shape = 's32[1]{0}', space=sflag, size = 0x4, scoped, tag = 'scoped memory for tpu_custom_call.1']
    %10 = vsyncpa [#allocation3], 0
    %11 = vsyncpa [#allocation5], 0
    // Predicated region
    $region2: #{tpu_custom_call.1} parent=1 // pred_check
      _
    $region3: #{tpu_custom_call.1} parent=1 // pred_check_branch
      %13 = sbr.rel (0) target = $region5
    $region4: #{tpu_custom_call.1} parent=1 // pred_region
      _
    $region5: #{tpu_custom_call.1} parent=1 // pred_fallthru
      _
    // Predicated region
    $region6: #{tpu_custom_call.1} parent=1 // pred_check
      _
    $region7: #{tpu_custom_call.1} parent=1 // pred_check_branch
      %15 = sbr.rel (0) target = $region9
    $region8: #{tpu_custom_call.1} parent=1 // pred_region
      _
    $region9: #{tpu_custom_call.1} parent=1 // pred_fallthru
      _
    // Predicated region
    $region10: #{tpu_custom_call.1} parent=1 // pred_check
      _
    $region11: #{tpu_custom_call.1} parent=1 // pred_check_branch
      %17 = sbr.rel (0) target = $region13
    $region12: #{tpu_custom_call.1} parent=1 // pred_region
      _
    $region13: #{tpu_custom_call.1} parent=1 // pred_fallthru
      _
    %v18 = vld [vmem:[%s0] sm:$0xff]
    %v19 = vld [vmem:[%s1] sm:$0xff]
    %v20 = vld [vmem:[%s1 + $0x8] sm:$0xff]
    %v21 = vld [vmem:[%s1 + $0x10] sm:$0x1]
    %v22 = vld [vmem:[%s2] sm:$0xff]
    %v23 = vld [vmem:[%s2 + $0x8] sm:$0xff]
    %v24 = vld [vmem:[%s2 + $0x10] sm:$0xff]
    %v25 = vld [vmem:[%s2 + $0x18] sm:$0xff]
    %v26 = vld [vmem:[%s2 + $0x20] sm:$0xff]
    %v27 = vld [vmem:[%s2 + $0x28] sm:$0xff]
    %v28 = vld [vmem:[%s2 + $0x30] sm:$0xff]
    %v29 = vld [vmem:[%s2 + $0x38] sm:$0xff]
    %v30 = vld [vmem:[%s2 + $0x40] sm:$0x1]
    %v31 = vperm.slane %v21, 0
    %vm32 = vcmask 130048
    %v34 = vsel %vm32, %v18, 0
    %36 = vmatpush.msra.mxu0 0.0
    %37 = vmatpush.msra.mxu0 0.0
    %38 = vmatpush.msra.mxu0 0.0
    %39 = vmatpush.msra.mxu0 0.0
    %40 = vmatpush.msra.mxu0 0.0
    %41 = vmatpush.msra.mxu0 0.0
    %42 = vmatpush.msra.mxu0 0.0
    %43 = vmatpush.msra.mxu0 0.0
    %44 = vmatpush.msra.mxu0 0.0
    %45 = vmatpush.msra.mxu0 0.0
    %46 = vmatpush.msra.mxu0 0.0
    %47 = vmatpush.msra.mxu0 0.0
    %48 = vmatpush.msra.mxu0 0.0
    %49 = vmatpush.msra.mxu0 0.0
    %50 = vmatpush.msra.mxu0 %v20
    %51 = vmatpush.msra.mxu0 %v19
    %52 = vmatmul.f32.gmra.mxu0 %v34
    %v53 = vpop.f32.mrf.mxu0
    %v54 = vadd.f32 %v31, %v53
    %55 = vdwg.mxu0
    %v56 = vxor.u32 %v54, 2147483648
    %v57 = vmul.f32 %v56, 1.442695
    %v58 = vpow.pop %v57
    %v59 = vadd.f32 %v58, 1.0
    %v60 = vrcp.pop %v59
    %v61 = vmul.f32 %v59, %v60
    %v62 = vsub.f32 1.0, %v61
    %v63 = vmul.f32 %v60, %v62
    %v64 = vadd.f32 %v60, %v63
    %vm65 = vweird.f32 %v59
    %vm66 = vweird.f32 %v60
    %vm67 = vmor %vm65, %vm66
    %v68 = vsel %vm67, %v60, %v64
    %v69 = vand.u32 2147483647, %v59
    %vm70 = vcmp.eq.f32.partialorder %v69, 8.507059e+37
    %v71 = vand.u32 %v59, 2147483648
    %v72 = vor.u32 1.1754944e-38, %v71
    %v73 = vsel %vm70, %v72, %v68
    %v74 = vmul.f32 1.0, %v73
    %v75 = vmul.f32 %v54, %v74
    %v76 = vperm.slane %v30, 0
    %vm77 = vcmask 523264
    %v79 = vsel %vm77, %v75, 0
    %81 = vmatpush.msra.mxu0 0.0
    %82 = vmatpush.msra.mxu0 0.0
    %83 = vmatpush.msra.mxu0 0.0
    %84 = vmatpush.msra.mxu0 0.0
    %85 = vmatpush.msra.mxu0 0.0
    %86 = vmatpush.msra.mxu0 0.0
    %87 = vmatpush.msra.mxu0 0.0
    %88 = vmatpush.msra.mxu0 0.0
    %89 = vmatpush.msra.mxu0 %v29
    %90 = vmatpush.msra.mxu0 %v28
    %91 = vmatpush.msra.mxu0 %v27
    %92 = vmatpush.msra.mxu0 %v26
    %93 = vmatpush.msra.mxu0 %v25
    %94 = vmatpush.msra.mxu0 %v24
    %95 = vmatpush.msra.mxu0 %v23
    %96 = vmatpush.msra.mxu0 %v22
    %97 = vmatmul.f32.gmra.mxu0 %v79
    %v98 = vpop.f32.mrf.mxu0
    %v99 = vadd.f32 %v76, %v98
    %100 = vdwg.mxu0
    %vm101 = vcmask 261120
    %102 = vst.msk [vmem:[#allocation2] sm:$0xff] %vm101, %v99
    %v103 = vsel %vm101, %v99, 0.0
    %v104 = vrot.slane %v103, 4
    %v105 = vadd.f32 %v103, %v104
    %v106 = vrot.slane %v105, 2
    %v107 = vadd.f32 %v105, %v106
    %v108 = vrot.slane %v107, 1
    %v109 = vadd.f32 %v107, %v108
    %v110 = vmul.f32 %v99, %v99
    %v111 = vsel %vm101, %v110, 0.0
    %v112 = vrot.slane %v111, 4
    %v113 = vadd.f32 %v111, %v112
    %v114 = vrot.slane %v113, 2
    %v115 = vadd.f32 %v113, %v114
    %v116 = vrot.slane %v115, 1
    %v117 = vadd.f32 %v115, %v116
    %vm118 = vcmask 1040384
    %v119 = vsel %vm118, %v109, %v117
    %p120 = scmp.eq.s32.totalorder 0, 0
    // Predicated region
    $region14: #{tpu_custom_call.1} parent=1 // pred_check
      %p121 = pneg %p120
    $region15: #{tpu_custom_call.1} parent=1 // pred_check_branch
      %123 = sbr.rel (%p121) target = $region17
    $region16: #{tpu_custom_call.1} parent=1 // pred_region
      %vm124 = vcmask 254976
      %125 = vst.msk [vmem:[#allocation4] sm:$0x3] %vm124, 0.0
    $region17: #{tpu_custom_call.1} parent=1 // pred_fallthru
      _
    %v126 = vld [vmem:[#allocation4] sm:$0x3]
    %v127 = vadd.f32 %v126, %v119
    %vm128 = vcmask 254976
    %129 = vst.msk [vmem:[#allocation4] sm:$0x3] %vm128, %v127
    // Predicated region
    $region18: #{tpu_custom_call.1} parent=1 // pred_check
      _
    $region19: #{tpu_custom_call.1} parent=1 // pred_check_branch
      %131 = sbr.rel (0) target = $region21
    $region20: #{tpu_custom_call.1} parent=1 // pred_region
      %133 = vsyncadd [#allocation3], 0
      %s135 = sshll.u32 [#allocation2], 4
      %s136 = int_to_ptr.vmem [resolvable:$true] %s135
      %s137 = sshll.u32 %s3, 4
      %s138 = int_to_ptr.hbm [resolvable:$true] %s137
      %140 = dma.vmem_to_hbm [thread:$0]  %s136, 128, %s138, [#allocation3]
    $region21: #{tpu_custom_call.1} parent=1 // pred_fallthru
      _
    // Predicated region
    $region22: #{tpu_custom_call.1} parent=1 // pred_check
      _
    $region23: #{tpu_custom_call.1} parent=1 // pred_check_branch
      %142 = sbr.rel (0) target = $region25
    $region24: #{tpu_custom_call.1} parent=1 // pred_region
      %144 = vsyncadd [#allocation5], 0
      %s146 = sshll.u32 [#allocation4], 4
      %s147 = int_to_ptr.vmem [resolvable:$true] %s146
      %s148 = sshll.u32 %s4, 4
      %s149 = int_to_ptr.hbm [resolvable:$true] %s148
      %151 = dma.vmem_to_hbm [thread:$0]  %s147, 32, %s149, [#allocation5]
    $region25: #{tpu_custom_call.1} parent=1 // pred_fallthru
      _
    // Predicated region
    $region26: #{tpu_custom_call.1} parent=1 // pred_check
      _
    $region27: #{tpu_custom_call.1} parent=1 // pred_check_branch
      %153 = sbr.rel (0) target = $region29
    $region28: #{tpu_custom_call.1} parent=1 // pred_region
      %155 = dma.done [#allocation3], 128
    $region29: #{tpu_custom_call.1} parent=1 // pred_fallthru
      _
    // Predicated region
    $region30: #{tpu_custom_call.1} parent=1 // pred_check
      _
    $region31: #{tpu_custom_call.1} parent=1 // pred_check_branch
      %157 = sbr.rel (0) target = $region33
    $region32: #{tpu_custom_call.1} parent=1 // pred_region
      %159 = dma.done [#allocation5], 32
    $region33: #{tpu_custom_call.1} parent=1 // pred_fallthru
      _
    %160 = vsyncpa [#allocation3], 1
    %161 = vsyncpa [#allocation5], 1

</llo_original>
